<compile_context>
chip_gen: v7x
topology: tpu7x:2x2x1
jax: 0.10.0
libtpu: 0.0.40
codegen_flags: <defaults>
</compile_context>

<pallas_src>
import functools

import jax
import jax.numpy as jnp
from jax.experimental import pallas as pl
from jax.experimental.pallas import tpu as pltpu


def _round_up(n: int, m: int) -> int:
    return ((n + m - 1) // m) * m


def _pick_compute_dtype():
    """bf16 weights/activations on v6e/v7x, f32 otherwise (incl. v5e)."""
    try:
        kind = jax.devices()[0].device_kind.lower()
    except Exception:
        return jnp.float32
    if any(tag in kind for tag in ("v6", "v7", "7x")):
        return jnp.bfloat16
    return jnp.float32


def _make_mlp_kernel(n_layers: int, compute_dtype):
    """Kernel over one batch tile: h_{l+1} = tanh(W_l @ h_l + b_l)."""

    def kernel(*refs):
        x_ref = refs[0]
        o_ref = refs[-1]
        p_refs = refs[1:-1]  # [w1, b1, w2, b2, ...]

        h = x_ref[...]  # (F_in_pad, TB), compute_dtype
        for l in range(n_layers):
            w = p_refs[2 * l][...]        # (F_out_pad, F_in_pad), compute_dtype
            b = p_refs[2 * l + 1][...]    # (F_out_pad, 1), f32
            # MXU matmul with f32 accumulation; bias add + tanh in f32 (VPU/EUP).
            h = jnp.tanh(jnp.dot(w, h, preferred_element_type=jnp.float32) + b)
            if l < n_layers - 1:
                h = h.astype(compute_dtype)
        o_ref[...] = h.astype(o_ref.dtype)

    return kernel


def init_params(key, input_size=25, hidden_sizes=(25, 25), output_size=1):
    """nn.Linear default init (uniform +-1/sqrt(fan_in)).

    Weights kept in PyTorch orientation (out_features, in_features); biases
    (out_features,). Returned flat: (w1, b1, w2, b2, ..., wN, bN), float32.
    """
    sizes = [input_size, *hidden_sizes, output_size]
    params = []
    for i in range(len(sizes) - 1):
        fan_in, fan_out = sizes[i], sizes[i + 1]
        key, kw, kb = jax.random.split(key, 3)
        bound = 1.0 / jnp.sqrt(jnp.float32(fan_in))
        w = jax.random.uniform(kw, (fan_out, fan_in), jnp.float32, -bound, bound)
        b = jax.random.uniform(kb, (fan_out,), jnp.float32, -bound, bound)
        params.extend([w, b])
    return tuple(params)


def _prepare_params(params, compute_dtype):
    """Zero-pad feature dims to multiples of 8 and cast weights to compute dtype.

    Padding is mathematically inert: padded weight rows/cols are zero, padded
    bias entries are zero, and padded activation rows stay zero (tanh(0)=0
    only lands in rows we slice off).
    """
    prepared = []
    for w, b in zip(params[0::2], params[1::2]):
        out_f, in_f = w.shape
        out_p, in_p = _round_up(out_f, 8), _round_up(in_f, 8)
        wp = jnp.zeros((out_p, in_p), jnp.float32).at[:out_f, :in_f].set(w)
        bp = jnp.zeros((out_p, 1), jnp.float32).at[:out_f, 0].set(b)
        prepared.extend([wp.astype(compute_dtype), bp])  # biases stay f32
    return tuple(prepared)


@functools.partial(jax.jit, static_argnames=("compute_dtype",))
def value_network_forward(x, params, compute_dtype=None):
    """x: (B, ...) board tensor; flattens from dim 1 on (like torch.flatten(x, 1)).

    Returns (B, output_size) float32, matching ValueNetwork.forward.
    """
    if compute_dtype is None:
        compute_dtype = jnp.float32
    x = jnp.asarray(x, jnp.float32)
    B = x.shape[0]
    xf = x.reshape(B, -1)  # (B, 25)
    in_features = xf.shape[1]
    out_features = params[-2].shape[0]
    n_layers = len(params) // 2

    prepared = _prepare_params(params, compute_dtype)
    f_in_pad = prepared[0].shape[1]     # 32
    out_pad = prepared[-2].shape[0]     # 8

    # Batch on the lane axis: pad B to a multiple of 128, tile with TB lanes.
    b_lane = max(128, _round_up(B, 128))
    tb = min(b_lane, 1024)
    b_pad = _round_up(b_lane, tb)
    n_blocks = b_pad // tb

    # X^T, zero-padded: (F_in_pad, B_pad) in compute dtype.
    xt = jnp.zeros((f_in_pad, b_pad), compute_dtype)
    xt = xt.at[:in_features, :B].set(xf.T.astype(compute_dtype))

    kernel = _make_mlp_kernel(n_layers, compute_dtype)

    in_specs = [pl.BlockSpec((f_in_pad, tb), lambda i: (0, i))]
    # Weights/biases: full-array blocks with constant index maps -> VMEM resident.
    in_specs += [pl.BlockSpec(p.shape, lambda i: (0, 0)) for p in prepared]

    out = pl.pallas_call(
        kernel,
        out_shape=jax.ShapeDtypeStruct((out_pad, b_pad), jnp.float32),
        grid=(n_blocks,),
        in_specs=in_specs,
        out_specs=pl.BlockSpec((out_pad, tb), lambda i: (0, i)),
        compiler_params=pltpu.CompilerParams(
            dimension_semantics=("parallel",)),
    )(xt, *prepared)

    # Slice off feature/batch padding and restore (B, out_features) layout.
    return out[:out_features, :B].T


# TODO(synk): modelPath loading / torch.save persistence from the original
# module have no Pallas equivalent; weights come from init_params instead.


if __name__ == "__main__":
    key = jax.random.PRNGKey(0)
    kp, kx = jax.random.split(key)

    params = init_params(kp)

    # Board state: batch of 2 boards of shape 5x5 with values in {-1, +1}.
    B = 2
    x = jnp.where(
        jax.random.bernoulli(kx, 0.5, (B, 5, 5)), 1.0, -1.0
    ).astype(jnp.float32)

    compute_dtype = _pick_compute_dtype()
    out = value_network_forward(x, params, compute_dtype=compute_dtype)
    out = jax.block_until_ready(out)

    # Reference check in plain JAX (f32, unpadded weights).
    w1, b1, w2, b2, w3, b3 = params
    xf = x.reshape(B, -1)
    ref = jnp.tanh(
        jnp.tanh(jnp.tanh(xf @ w1.T + b1) @ w2.T + b2) @ w3.T + b3
    )

    assert out.shape == (B, 1), out.shape
    atol = 1e-5 if compute_dtype == jnp.float32 else 5e-2
    assert jnp.allclose(out, ref, atol=atol), (out, ref)

    print("KERNEL_OK")
</pallas_src>

<mosaic_0001>
module attributes {stable_mosaic.version = 11 : i64} {
  func.func @kernel(%arg0: i32, %arg1: memref<32x128xf32, #tpu.memory_space<vmem>>, %arg2: memref<32x32xf32, #tpu.memory_space<vmem>>, %arg3: memref<32x1xf32, #tpu.memory_space<vmem>>, %arg4: memref<32x32xf32, #tpu.memory_space<vmem>>, %arg5: memref<32x1xf32, #tpu.memory_space<vmem>>, %arg6: memref<8x32xf32, #tpu.memory_space<vmem>>, %arg7: memref<8x1xf32, #tpu.memory_space<vmem>>, %arg8: memref<8x128xf32, #tpu.memory_space<vmem>>) attributes {dimension_semantics = [#tpu.dimension_semantics<parallel>], iteration_bounds = array<i64: 1>, scalar_prefetch = 0 : i64, scratch_operands = 0 : i64, tpu.core_type = #tpu.core_type<tc>, window_params = [{transform_indices = @transform_0, window_bounds = array<i64: 32, 128>}, {pipeline_mode = #tpu.pipeline_mode<synchronous>, transform_indices = @transform_1, window_bounds = array<i64: 32, 32>}, {pipeline_mode = #tpu.pipeline_mode<synchronous>, transform_indices = @transform_2, window_bounds = array<i64: 32, 1>}, {pipeline_mode = #tpu.pipeline_mode<synchronous>, transform_indices = @transform_3, window_bounds = array<i64: 32, 32>}, {pipeline_mode = #tpu.pipeline_mode<synchronous>, transform_indices = @transform_4, window_bounds = array<i64: 32, 1>}, {pipeline_mode = #tpu.pipeline_mode<synchronous>, transform_indices = @transform_5, window_bounds = array<i64: 8, 32>}, {pipeline_mode = #tpu.pipeline_mode<synchronous>, transform_indices = @transform_6, window_bounds = array<i64: 8, 1>}, {transform_indices = @transform_7, window_bounds = array<i64: 8, 128>}]} {
    %c0 = arith.constant 0 : index
    %c0_0 = arith.constant 0 : index
    %0 = vector.load %arg1[%c0, %c0_0] : memref<32x128xf32, #tpu.memory_space<vmem>>, vector<32x128xf32>
    %c0_1 = arith.constant 0 : index
    %c0_2 = arith.constant 0 : index
    %1 = vector.load %arg2[%c0_1, %c0_2] : memref<32x32xf32, #tpu.memory_space<vmem>>, vector<32x32xf32>
    %c0_3 = arith.constant 0 : index
    %c0_4 = arith.constant 0 : index
    %2 = vector.load %arg3[%c0_3, %c0_4] : memref<32x1xf32, #tpu.memory_space<vmem>>, vector<32x1xf32>
    %cst = arith.constant dense<0.000000e+00> : vector<32x128xf32>
    %3 = tpu.matmul %1, %0, %cst {dimension_numbers = #tpu.dot_dimension_numbers<[1], [0], [0], [1], [0, 0, 1, 1], [], []>} : vector<32x32xf32>, vector<32x128xf32>, vector<32x128xf32> -> vector<32x128xf32>
    %4 = vector.broadcast %2 : vector<32x1xf32> to vector<32x128xf32>
    %5 = arith.addf %3, %4 : vector<32x128xf32>
    %6 = math.tanh %5 : vector<32x128xf32>
    %c0_5 = arith.constant 0 : index
    %c0_6 = arith.constant 0 : index
    %7 = vector.load %arg4[%c0_5, %c0_6] : memref<32x32xf32, #tpu.memory_space<vmem>>, vector<32x32xf32>
    %c0_7 = arith.constant 0 : index
    %c0_8 = arith.constant 0 : index
    %8 = vector.load %arg5[%c0_7, %c0_8] : memref<32x1xf32, #tpu.memory_space<vmem>>, vector<32x1xf32>
    %cst_9 = arith.constant dense<0.000000e+00> : vector<32x128xf32>
    %9 = tpu.matmul %7, %6, %cst_9 {dimension_numbers = #tpu.dot_dimension_numbers<[1], [0], [0], [1], [0, 0, 1, 1], [], []>} : vector<32x32xf32>, vector<32x128xf32>, vector<32x128xf32> -> vector<32x128xf32>
    %10 = vector.broadcast %8 : vector<32x1xf32> to vector<32x128xf32>
    %11 = arith.addf %9, %10 : vector<32x128xf32>
    %12 = math.tanh %11 : vector<32x128xf32>
    %c0_10 = arith.constant 0 : index
    %c0_11 = arith.constant 0 : index
    %13 = vector.load %arg6[%c0_10, %c0_11] : memref<8x32xf32, #tpu.memory_space<vmem>>, vector<8x32xf32>
    %c0_12 = arith.constant 0 : index
    %c0_13 = arith.constant 0 : index
    %14 = vector.load %arg7[%c0_12, %c0_13] : memref<8x1xf32, #tpu.memory_space<vmem>>, vector<8x1xf32>
    %cst_14 = arith.constant dense<0.000000e+00> : vector<8x128xf32>
    %15 = tpu.matmul %13, %12, %cst_14 {dimension_numbers = #tpu.dot_dimension_numbers<[1], [0], [0], [1], [0, 0, 1, 1], [], []>} : vector<8x32xf32>, vector<32x128xf32>, vector<8x128xf32> -> vector<8x128xf32>
    %16 = vector.broadcast %14 : vector<8x1xf32> to vector<8x128xf32>
    %17 = arith.addf %15, %16 : vector<8x128xf32>
    %18 = math.tanh %17 : vector<8x128xf32>
    %c0_15 = arith.constant 0 : index
    %c0_16 = arith.constant 0 : index
    %19 = vector.load %arg8[%c0_15, %c0_16] : memref<8x128xf32, #tpu.memory_space<vmem>>, vector<8x128xf32>
    tpu.vector_store %arg8[%c0_15, %c0_16], %18 {strides = array<i32>} : memref<8x128xf32, #tpu.memory_space<vmem>>, vector<8x128xf32>,
    return
  }
  func.func @transform_0(%arg0: i32) -> (i32, i32) {
    %c0_i32 = arith.constant 0 : i32
    %c0_i32_0 = arith.constant 0 : i32
    return %c0_i32, %arg0 : i32, i32
  }
  func.func @transform_1(%arg0: i32) -> (i32, i32) {
    %c0_i32 = arith.constant 0 : i32
    %c0_i32_0 = arith.constant 0 : i32
    %c0_i32_1 = arith.constant 0 : i32
    return %c0_i32, %c0_i32_0 : i32, i32
  }
  func.func @transform_2(%arg0: i32) -> (i32, i32) {
    %c0_i32 = arith.constant 0 : i32
    %c0_i32_0 = arith.constant 0 : i32
    %c0_i32_1 = arith.constant 0 : i32
    return %c0_i32, %c0_i32_0 : i32, i32
  }
  func.func @transform_3(%arg0: i32) -> (i32, i32) {
    %c0_i32 = arith.constant 0 : i32
    %c0_i32_0 = arith.constant 0 : i32
    %c0_i32_1 = arith.constant 0 : i32
    return %c0_i32, %c0_i32_0 : i32, i32
  }
  func.func @transform_4(%arg0: i32) -> (i32, i32) {
    %c0_i32 = arith.constant 0 : i32
    %c0_i32_0 = arith.constant 0 : i32
    %c0_i32_1 = arith.constant 0 : i32
    return %c0_i32, %c0_i32_0 : i32, i32
  }
  func.func @transform_5(%arg0: i32) -> (i32, i32) {
    %c0_i32 = arith.constant 0 : i32
    %c0_i32_0 = arith.constant 0 : i32
    %c0_i32_1 = arith.constant 0 : i32
    return %c0_i32, %c0_i32_0 : i32, i32
  }
  func.func @transform_6(%arg0: i32) -> (i32, i32) {
    %c0_i32 = arith.constant 0 : i32
    %c0_i32_0 = arith.constant 0 : i32
    %c0_i32_1 = arith.constant 0 : i32
    return %c0_i32, %c0_i32_0 : i32, i32
  }
  func.func @transform_7(%arg0: i32) -> (i32, i32) {
    %c0_i32 = arith.constant 0 : i32
    %c0_i32_0 = arith.constant 0 : i32
    return %c0_i32, %arg0 : i32, i32
  }
}

</mosaic_0001>

<llo_original>
// kernel: value_network_forward.1
$region0: #{value_network_forward.1}
  #allocation0 [shape = 'u32[]', space=smem, size = 0x4, offset = 0x4, fixed_abs, tag = 'smem constant byte address 0x4 - core index']
  #allocation1 [shape = 'u32[144,128]{1,0:T(1,128)}', space=vmem, size = 0x12000, scoped, tag = 'internal scratch']
  %s0 = inlined_call_operand.vmem [shape: f32[32,128], index: 0, kind: input, shape index: {}]
  %s1 = inlined_call_operand.vmem [shape: f32[32,32], index: 1, kind: input, shape index: {}]
  %s2 = inlined_call_operand.vmem [shape: f32[32,1], index: 2, kind: input, shape index: {}]
  %s3 = inlined_call_operand.vmem [shape: f32[32,32], index: 3, kind: input, shape index: {}]
  %s4 = inlined_call_operand.vmem [shape: f32[32,1], index: 4, kind: input, shape index: {}]
  %s5 = inlined_call_operand.vmem [shape: f32[8,32], index: 5, kind: input, shape index: {}]
  %s6 = inlined_call_operand.vmem [shape: f32[8,1], index: 6, kind: input, shape index: {}]
  %s7 = inlined_call_operand.vmem [shape: f32[8,128], index: 7, kind: output, shape index: {}]
  %s8 = sld [smem:[#allocation0]]
  $region38: #{value_network_forward.1} parent=0
    _
  %s10 = ssub.s32 1, %s8
  %s11 = scalar_select 0, %s10, %s8
  // Predicated region
  $region2: #{value_network_forward.1} parent=0 // pred_check
    _
  $region3: #{value_network_forward.1} parent=0 // pred_check_branch
    %13 = sbr.rel (0) target = $region5
  $region4: #{value_network_forward.1} parent=0 // pred_region
    _
  $region5: #{value_network_forward.1} parent=0 // pred_fallthru
    _
  // Predicated region
  $region6: #{value_network_forward.1} parent=0 // pred_check
    _
  $region7: #{value_network_forward.1} parent=0 // pred_check_branch
    %15 = sbr.rel (0) target = $region9
  $region8: #{value_network_forward.1} parent=0 // pred_region
    _
  $region9: #{value_network_forward.1} parent=0 // pred_fallthru
    _
  // Predicated region
  $region10: #{value_network_forward.1} parent=0 // pred_check
    _
  $region11: #{value_network_forward.1} parent=0 // pred_check_branch
    %17 = sbr.rel (0) target = $region13
  $region12: #{value_network_forward.1} parent=0 // pred_region
    _
  $region13: #{value_network_forward.1} parent=0 // pred_fallthru
    _
  // Predicated region
  $region14: #{value_network_forward.1} parent=0 // pred_check
    _
  $region15: #{value_network_forward.1} parent=0 // pred_check_branch
    %19 = sbr.rel (0) target = $region17
  $region16: #{value_network_forward.1} parent=0 // pred_region
    _
  $region17: #{value_network_forward.1} parent=0 // pred_fallthru
    _
  // Predicated region
  $region18: #{value_network_forward.1} parent=0 // pred_check
    _
  $region19: #{value_network_forward.1} parent=0 // pred_check_branch
    %21 = sbr.rel (0) target = $region21
  $region20: #{value_network_forward.1} parent=0 // pred_region
    _
  $region21: #{value_network_forward.1} parent=0 // pred_fallthru
    _
  // Predicated region
  $region22: #{value_network_forward.1} parent=0 // pred_check
    _
  $region23: #{value_network_forward.1} parent=0 // pred_check_branch
    %23 = sbr.rel (0) target = $region25
  $region24: #{value_network_forward.1} parent=0 // pred_region
    _
  $region25: #{value_network_forward.1} parent=0 // pred_fallthru
    _
  // Predicated region
  $region26: #{value_network_forward.1} parent=0 // pred_check
    _
  $region27: #{value_network_forward.1} parent=0 // pred_check_branch
    %25 = sbr.rel (0) target = $region29
  $region28: #{value_network_forward.1} parent=0 // pred_region
    _
  $region29: #{value_network_forward.1} parent=0 // pred_fallthru
    _
  %v26 = vld [vmem:[%s0] sm:$0xff]
  %v27 = vld [vmem:[%s0 + $0x8] sm:$0xff]
  %v28 = vld [vmem:[%s0 + $0x10] sm:$0xff]
  %v29 = vld [vmem:[%s0 + $0x18] sm:$0xff]
  %v30 = vld [vmem:[%s1] sm:$0xff]
  %v31 = vld [vmem:[%s1 + $0x8] sm:$0xff]
  %v32 = vld [vmem:[%s1 + $0x10] sm:$0xff]
  %v33 = vld [vmem:[%s1 + $0x18] sm:$0xff]
  %v34 = vld [vmem:[%s2] sm:$0xff]
  %v35 = vld [vmem:[%s2 + $0x8] sm:$0xff]
  %v36 = vld [vmem:[%s2 + $0x10] sm:$0xff]
  %v37 = vld [vmem:[%s2 + $0x18] sm:$0xff]
  %39 = vset.pattern.permute.xlu0 0
  %40 = vperm.xlu0 %39, %v34
  %v41 = vpop.permute.xlu0 %40
  %44 = vset.pattern.permute.xlu0 0
  %45 = vperm.xlu0 %44, %v35
  %v46 = vpop.permute.xlu0 %45
  %49 = vset.pattern.permute.xlu0 0
  %50 = vperm.xlu0 %49, %v36
  %v51 = vpop.permute.xlu0 %50
  %54 = vset.pattern.permute.xlu0 0
  %55 = vperm.xlu0 %54, %v37
  %v56 = vpop.permute.xlu0 %55
  %vm58 = vcmask 261120
  %v60 = vsel %vm58, %v30, 0
  %v63 = vsel %vm58, %v31, 0
  %v66 = vsel %vm58, %v32, 0
  %v69 = vsel %vm58, %v33, 0
  %71 = vmatprep.subr.mxu0 0.0
  %72 = vmatpush1.msra.mxu0 %v26
  %73 = vmatprep.subr.mxu0 0.0
  %74 = vmatpush1.msra.mxu0 %v27
  %75 = vmatprep.subr.mxu0 0.0
  %76 = vmatpush1.msra.mxu0 %v28
  %77 = vmatprep.subr.mxu0 0.0
  %78 = vmatpush1.msra.mxu0 %v29
  %79 = vmatprep.subr.mxu0 0.0
  %80 = vmatpush1.msra.mxu0 0.0
  %81 = vmatprep.subr.mxu0 0.0
  %82 = vmatpush1.msra.mxu0 0.0
  %83 = vmatprep.subr.mxu0 0.0
  %84 = vmatpush1.msra.mxu0 0.0
  %85 = vmatprep.subr.mxu0 0.0
  %86 = vmatpush1.msra.mxu0 0.0
  %87 = vmatprep.subr.mxu0 0.0
  %88 = vmatpush1.msra.mxu0 0.0
  %89 = vmatprep.subr.mxu0 0.0
  %90 = vmatpush1.msra.mxu0 0.0
  %91 = vmatprep.subr.mxu0 0.0
  %92 = vmatpush1.msra.mxu0 0.0
  %93 = vmatprep.subr.mxu0 0.0
  %94 = vmatpush1.msra.mxu0 0.0
  %95 = vmatprep.subr.mxu0 0.0
  %96 = vmatpush1.msra.mxu0 0.0
  %97 = vmatprep.subr.mxu0 0.0
  %98 = vmatpush1.msra.mxu0 0.0
  %99 = vmatprep.subr.mxu0 0.0
  %100 = vmatpush1.msra.mxu0 0.0
  %101 = vmatprep.subr.mxu0 0.0
  %102 = vmatpush1.msra.mxu0 0.0
  %103 = vmatprep.subr.mxu0 0.0
  %104 = vmatpush1.msra.mxu0 0.0
  %105 = vmatprep.subr.mxu0 0.0
  %106 = vmatpush1.msra.mxu0 0.0
  %107 = vmatprep.subr.mxu0 0.0
  %108 = vmatpush1.msra.mxu0 0.0
  %109 = vmatprep.subr.mxu0 0.0
  %110 = vmatpush1.msra.mxu0 0.0
  %111 = vmatprep.subr.mxu0 0.0
  %112 = vmatpush1.msra.mxu0 0.0
  %113 = vmatprep.subr.mxu0 0.0
  %114 = vmatpush1.msra.mxu0 0.0
  %115 = vmatprep.subr.mxu0 0.0
  %116 = vmatpush1.msra.mxu0 0.0
  %117 = vmatprep.subr.mxu0 0.0
  %118 = vmatpush1.msra.mxu0 0.0
  %119 = vmatprep.subr.mxu0 0.0
  %120 = vmatpush1.msra.mxu0 0.0
  %121 = vmatprep.subr.mxu0 0.0
  %122 = vmatpush1.msra.mxu0 0.0
  %123 = vmatprep.subr.mxu0 0.0
  %124 = vmatpush1.msra.mxu0 0.0
  %125 = vmatprep.subr.mxu0 0.0
  %126 = vmatpush1.msra.mxu0 0.0
  %127 = vmatprep.subr.mxu0 0.0
  %128 = vmatpush1.msra.mxu0 0.0
  %129 = vmatprep.subr.mxu0 0.0
  %130 = vmatpush1.msra.mxu0 0.0
  %131 = vmatprep.subr.mxu0 0.0
  %132 = vmatpush1.msra.mxu0 0.0
  %133 = vmatprep.subr.mxu0 0.0
  %134 = vmatpush1.msra.mxu0 0.0
  %135 = vmatprep.mubr.f32.mxu0 0.0
  %136 = vmatmul.mubr.f32.gmra.mrb[0].mxu0 %v60
  %v137 = vpop.f32.mrb[0].mxu0
  %v138 = vadd.f32 %v41, %v137
  %v139 = vpop.f32.mrb[0].mxu0
  %140 = vmatprep.mubr.f32.mxu0 0.0
  %141 = vmatmul.mubr.f32.gmra.mrb[0].mxu0 %v63
  %v142 = vpop.f32.mrb[0].mxu0
  %v143 = vadd.f32 %v46, %v142
  %v144 = vpop.f32.mrb[0].mxu0
  %145 = vmatprep.mubr.f32.mxu0 0.0
  %146 = vmatmul.mubr.f32.gmra.mrb[0].mxu0 %v66
  %v147 = vpop.f32.mrb[0].mxu0
  %v148 = vadd.f32 %v51, %v147
  %v149 = vpop.f32.mrb[0].mxu0
  %150 = vmatprep.mubr.f32.mxu0 0.0
  %151 = vmatmul.mubr.f32.gmra.mrb[0].mxu0 %v69
  %v152 = vpop.f32.mrb[0].mxu0
  %v153 = vadd.f32 %v56, %v152
  %v154 = vpop.f32.mrb[0].mxu0
  %155 = vdwg.mxu0
  %v156 = vtanh.pop %v138
  %v157 = vtanh.pop %v143
  %v158 = vtanh.pop %v148
  %v159 = vtanh.pop %v153
  %v160 = vld [vmem:[%s3] sm:$0xff]
  %v161 = vld [vmem:[%s3 + $0x8] sm:$0xff]
  %v162 = vld [vmem:[%s3 + $0x10] sm:$0xff]
  %v163 = vld [vmem:[%s3 + $0x18] sm:$0xff]
  %v164 = vld [vmem:[%s4] sm:$0xff]
  %v165 = vld [vmem:[%s4 + $0x8] sm:$0xff]
  %v166 = vld [vmem:[%s4 + $0x10] sm:$0xff]
  %v167 = vld [vmem:[%s4 + $0x18] sm:$0xff]
  %169 = vset.pattern.permute.xlu0 0
  %170 = vperm.xlu0 %169, %v164
  %v171 = vpop.permute.xlu0 %170
  %174 = vset.pattern.permute.xlu0 0
  %175 = vperm.xlu0 %174, %v165
  %v176 = vpop.permute.xlu0 %175
  %179 = vset.pattern.permute.xlu0 0
  %180 = vperm.xlu0 %179, %v166
  %v181 = vpop.permute.xlu0 %180
  %184 = vset.pattern.permute.xlu0 0
  %185 = vperm.xlu0 %184, %v167
  %v186 = vpop.permute.xlu0 %185
  %v189 = vsel %vm58, %v160, 0
  %v192 = vsel %vm58, %v161, 0
  %v195 = vsel %vm58, %v162, 0
  %v198 = vsel %vm58, %v163, 0
  %200 = vmatprep.subr.mxu0 0.0
  %201 = vmatpush1.msra.mxu0 %v156
  %202 = vmatprep.subr.mxu0 0.0
  %203 = vmatpush1.msra.mxu0 %v157
  %204 = vmatprep.subr.mxu0 0.0
  %205 = vmatpush1.msra.mxu0 %v158
  %206 = vmatprep.subr.mxu0 0.0
  %207 = vmatpush1.msra.mxu0 %v159
  %208 = vmatprep.subr.mxu0 0.0
  %209 = vmatpush1.msra.mxu0 0.0
  %210 = vmatprep.subr.mxu0 0.0
  %211 = vmatpush1.msra.mxu0 0.0
  %212 = vmatprep.subr.mxu0 0.0
  %213 = vmatpush1.msra.mxu0 0.0
  %214 = vmatprep.subr.mxu0 0.0
  %215 = vmatpush1.msra.mxu0 0.0
  %216 = vmatprep.subr.mxu0 0.0
  %217 = vmatpush1.msra.mxu0 0.0
  %218 = vmatprep.subr.mxu0 0.0
  %219 = vmatpush1.msra.mxu0 0.0
  %220 = vmatprep.subr.mxu0 0.0
  %221 = vmatpush1.msra.mxu0 0.0
  %222 = vmatprep.subr.mxu0 0.0
  %223 = vmatpush1.msra.mxu0 0.0
  %224 = vmatprep.subr.mxu0 0.0
  %225 = vmatpush1.msra.mxu0 0.0
  %226 = vmatprep.subr.mxu0 0.0
  %227 = vmatpush1.msra.mxu0 0.0
  %228 = vmatprep.subr.mxu0 0.0
  %229 = vmatpush1.msra.mxu0 0.0
  %230 = vmatprep.subr.mxu0 0.0
  %231 = vmatpush1.msra.mxu0 0.0
  %232 = vmatprep.subr.mxu0 0.0
  %233 = vmatpush1.msra.mxu0 0.0
  %234 = vmatprep.subr.mxu0 0.0
  %235 = vmatpush1.msra.mxu0 0.0
  %236 = vmatprep.subr.mxu0 0.0
  %237 = vmatpush1.msra.mxu0 0.0
  %238 = vmatprep.subr.mxu0 0.0
  %239 = vmatpush1.msra.mxu0 0.0
  %240 = vmatprep.subr.mxu0 0.0
  %241 = vmatpush1.msra.mxu0 0.0
  %242 = vmatprep.subr.mxu0 0.0
  %243 = vmatpush1.msra.mxu0 0.0
  %244 = vmatprep.subr.mxu0 0.0
  %245 = vmatpush1.msra.mxu0 0.0
  %246 = vmatprep.subr.mxu0 0.0
  %247 = vmatpush1.msra.mxu0 0.0
  %248 = vmatprep.subr.mxu0 0.0
  %249 = vmatpush1.msra.mxu0 0.0
  %250 = vmatprep.subr.mxu0 0.0
  %251 = vmatpush1.msra.mxu0 0.0
  %252 = vmatprep.subr.mxu0 0.0
  %253 = vmatpush1.msra.mxu0 0.0
  %254 = vmatprep.subr.mxu0 0.0
  %255 = vmatpush1.msra.mxu0 0.0
  %256 = vmatprep.subr.mxu0 0.0
  %257 = vmatpush1.msra.mxu0 0.0
  %258 = vmatprep.subr.mxu0 0.0
  %259 = vmatpush1.msra.mxu0 0.0
  %260 = vmatprep.subr.mxu0 0.0
  %261 = vmatpush1.msra.mxu0 0.0
  %262 = vmatprep.subr.mxu0 0.0
  %263 = vmatpush1.msra.mxu0 0.0
  %264 = vmatprep.mubr.f32.mxu0 0.0
  %265 = vmatmul.mubr.f32.gmra.mrb[0].mxu0 %v189
  %v266 = vpop.f32.mrb[0].mxu0
  %v267 = vadd.f32 %v171, %v266
  %v268 = vpop.f32.mrb[0].mxu0
  %269 = vmatprep.mubr.f32.mxu0 0.0
  %270 = vmatmul.mubr.f32.gmra.mrb[0].mxu0 %v192
  %v271 = vpop.f32.mrb[0].mxu0
  %v272 = vadd.f32 %v176, %v271
  %v273 = vpop.f32.mrb[0].mxu0
  %274 = vmatprep.mubr.f32.mxu0 0.0
  %275 = vmatmul.mubr.f32.gmra.mrb[0].mxu0 %v195
  %v276 = vpop.f32.mrb[0].mxu0
  %v277 = vadd.f32 %v181, %v276
  %v278 = vpop.f32.mrb[0].mxu0
  %279 = vmatprep.mubr.f32.mxu0 0.0
  %280 = vmatmul.mubr.f32.gmra.mrb[0].mxu0 %v198
  %v281 = vpop.f32.mrb[0].mxu0
  %v282 = vadd.f32 %v186, %v281
  %v283 = vpop.f32.mrb[0].mxu0
  %284 = vdwg.mxu0
  %v285 = vtanh.pop %v267
  %v286 = vtanh.pop %v272
  %v287 = vtanh.pop %v277
  %v288 = vtanh.pop %v282
  %v289 = vld [vmem:[%s5] sm:$0xff]
  %v290 = vld [vmem:[%s6] sm:$0xff]
  %292 = vset.pattern.permute.xlu0 0
  %293 = vperm.xlu0 %292, %v290
  %v294 = vpop.permute.xlu0 %293
  %v297 = vsel %vm58, %v289, 0
  %299 = vmatprep.subr.mxu0 0.0
  %300 = vmatpush1.msra.mxu0 %v285
  %301 = vmatprep.subr.mxu0 0.0
  %302 = vmatpush1.msra.mxu0 %v286
  %303 = vmatprep.subr.mxu0 0.0
  %304 = vmatpush1.msra.mxu0 %v287
  %305 = vmatprep.subr.mxu0 0.0
  %306 = vmatpush1.msra.mxu0 %v288
  %307 = vmatprep.subr.mxu0 0.0
  %308 = vmatpush1.msra.mxu0 0.0
  %309 = vmatprep.subr.mxu0 0.0
  %310 = vmatpush1.msra.mxu0 0.0
  %311 = vmatprep.subr.mxu0 0.0
  %312 = vmatpush1.msra.mxu0 0.0
  %313 = vmatprep.subr.mxu0 0.0
  %314 = vmatpush1.msra.mxu0 0.0
  %315 = vmatprep.subr.mxu0 0.0
  %316 = vmatpush1.msra.mxu0 0.0
  %317 = vmatprep.subr.mxu0 0.0
  %318 = vmatpush1.msra.mxu0 0.0
  %319 = vmatprep.subr.mxu0 0.0
  %320 = vmatpush1.msra.mxu0 0.0
  %321 = vmatprep.subr.mxu0 0.0
  %322 = vmatpush1.msra.mxu0 0.0
  %323 = vmatprep.subr.mxu0 0.0
  %324 = vmatpush1.msra.mxu0 0.0
  %325 = vmatprep.subr.mxu0 0.0
  %326 = vmatpush1.msra.mxu0 0.0
  %327 = vmatprep.subr.mxu0 0.0
  %328 = vmatpush1.msra.mxu0 0.0
  %329 = vmatprep.subr.mxu0 0.0
  %330 = vmatpush1.msra.mxu0 0.0
  %331 = vmatprep.subr.mxu0 0.0
  %332 = vmatpush1.msra.mxu0 0.0
  %333 = vmatprep.subr.mxu0 0.0
  %334 = vmatpush1.msra.mxu0 0.0
  %335 = vmatprep.subr.mxu0 0.0
  %336 = vmatpush1.msra.mxu0 0.0
  %337 = vmatprep.subr.mxu0 0.0
  %338 = vmatpush1.msra.mxu0 0.0
  %339 = vmatprep.subr.mxu0 0.0
  %340 = vmatpush1.msra.mxu0 0.0
  %341 = vmatprep.subr.mxu0 0.0
  %342 = vmatpush1.msra.mxu0 0.0
  %343 = vmatprep.subr.mxu0 0.0
  %344 = vmatpush1.msra.mxu0 0.0
  %345 = vmatprep.subr.mxu0 0.0
  %346 = vmatpush1.msra.mxu0 0.0
  %347 = vmatprep.subr.mxu0 0.0
  %348 = vmatpush1.msra.mxu0 0.0
  %349 = vmatprep.subr.mxu0 0.0
  %350 = vmatpush1.msra.mxu0 0.0
  %351 = vmatprep.subr.mxu0 0.0
  %352 = vmatpush1.msra.mxu0 0.0
  %353 = vmatprep.subr.mxu0 0.0
  %354 = vmatpush1.msra.mxu0 0.0
  %355 = vmatprep.subr.mxu0 0.0
  %356 = vmatpush1.msra.mxu0 0.0
  %357 = vmatprep.subr.mxu0 0.0
  %358 = vmatpush1.msra.mxu0 0.0
  %359 = vmatprep.subr.mxu0 0.0
  %360 = vmatpush1.msra.mxu0 0.0
  %361 = vmatprep.subr.mxu0 0.0
  %362 = vmatpush1.msra.mxu0 0.0
  %363 = vmatprep.mubr.f32.mxu0 0.0
  %364 = vmatmul.mubr.f32.gmra.mrb[0].mxu0 %v297
  %v365 = vpop.f32.mrb[0].mxu0
  %v366 = vadd.f32 %v294, %v365
  %v367 = vpop.f32.mrb[0].mxu0
  %368 = vdwg.mxu0
  %v369 = vtanh.pop %v366
  %370 = vst [vmem:[%s7] sm:$0xff] %v369
  // Predicated region
  $region30: #{value_network_forward.1} parent=0 // pred_check
    _
  $region31: #{value_network_forward.1} parent=0 // pred_check_branch
    %372 = sbr.rel (0) target = $region33
  $region32: #{value_network_forward.1} parent=0 // pred_region
    _
  $region33: #{value_network_forward.1} parent=0 // pred_fallthru
    _
  // Predicated region
  $region34: #{value_network_forward.1} parent=0 // pred_check
    _
  $region35: #{value_network_forward.1} parent=0 // pred_check_branch
    %374 = sbr.rel (0) target = $region37
  $region36: #{value_network_forward.1} parent=0 // pred_region
    _
  $region37: #{value_network_forward.1} parent=0 // pred_fallthru
    _

</llo_original>
